<compile_context>
chip_gen: v5e
topology: v5e:2x2
jax: 0.10.0
libtpu: 0.0.40
codegen_flags: <defaults>
</compile_context>

<pallas_src>
import jax
import jax.numpy as jnp
from jax.experimental import pallas as pl
from jax.experimental.pallas import tpu as pltpu

_LANE = 128


def _affine_kernel(p_ref, x_ref, o0_ref, o1_ref):
    # p_ref: SMEM (4,) f32 = [w0, w1, b0, b1]
    # x_ref: VMEM (block_rows, 128) f32
    # o0_ref / o1_ref: VMEM (block_rows, 128) f32 (logit 0 / logit 1)
    x = x_ref[...]
    w0 = p_ref[0]
    w1 = p_ref[1]
    b0 = p_ref[2]
    b1 = p_ref[3]
    o0_ref[...] = x * w0 + b0
    o1_ref[...] = x * w1 + b1


def perplexity_classifier(x, weight, bias, *, max_block_rows=512):
    """x: (B, 1) f32, weight: (2, 1) (torch layout), bias: (2,) -> (B, 2) f32."""
    B = x.shape[0]

    # Lane-dense padding: B -> rows_padded * 128 elements.
    rows_needed = max(1, -(-B // _LANE))
    block_rows = min(max_block_rows, ((rows_needed + 7) // 8) * 8)  # multiple of 8
    rows_padded = ((rows_needed + block_rows - 1) // block_rows) * block_rows
    b_padded = rows_padded * _LANE

    xf = x.reshape(-1).astype(jnp.float32)
    xf = jnp.pad(xf, (0, b_padded - B))
    x2d = xf.reshape(rows_padded, _LANE)

    # [w0, w1, b0, b1] as SMEM scalars.
    params = jnp.concatenate(
        [weight.reshape(-1).astype(jnp.float32), bias.reshape(-1).astype(jnp.float32)]
    )

    grid = (rows_padded // block_rows,)

    out0, out1 = pl.pallas_call(
        _affine_kernel,
        out_shape=(
            jax.ShapeDtypeStruct((rows_padded, _LANE), jnp.float32),
            jax.ShapeDtypeStruct((rows_padded, _LANE), jnp.float32),
        ),
        grid=grid,
        in_specs=[
            pl.BlockSpec(memory_space=pltpu.MemorySpace.SMEM),       # params (whole)
            pl.BlockSpec((block_rows, _LANE), lambda i: (i, 0)),      # x tile
        ],
        out_specs=(
            pl.BlockSpec((block_rows, _LANE), lambda i: (i, 0)),
            pl.BlockSpec((block_rows, _LANE), lambda i: (i, 0)),
        ),
        compiler_params=pltpu.CompilerParams(
            dimension_semantics=("parallel",),
        ),
    )(params, x2d)

    y0 = out0.reshape(-1)[:B]
    y1 = out1.reshape(-1)[:B]
    return jnp.stack([y0, y1], axis=-1)


if __name__ == "__main__":
    key = jax.random.PRNGKey(0)
    k_x, k_w, k_b = jax.random.split(key, 3)

    # nn.Linear(1, 2) params, torch default init: U(-1/sqrt(in), 1/sqrt(in)), in=1.
    weight = jax.random.uniform(k_w, (2, 1), jnp.float32, minval=-1.0, maxval=1.0)
    bias = jax.random.uniform(k_b, (2,), jnp.float32, minval=-1.0, maxval=1.0)

    # Small batch of scalar perplexity values.
    x = jax.random.normal(k_x, (8, 1), jnp.float32)

    out = perplexity_classifier(x, weight, bias)
    out = jax.block_until_ready(out)

    # Pure-JAX reference check.
    ref = x @ weight.T + bias
    assert out.shape == (8, 2)
    assert jnp.allclose(out, ref, atol=1e-5, rtol=1e-5)

    print("KERNEL_OK")
</pallas_src>

<mosaic_0001>
module attributes {stable_mosaic.version = 11 : i64} {
  func.func @_affine_kernel(%arg0: i32, %arg1: memref<4xf32, #tpu.memory_space<smem>>, %arg2: memref<8x128xf32, #tpu.memory_space<vmem>>, %arg3: memref<8x128xf32, #tpu.memory_space<vmem>>, %arg4: memref<8x128xf32, #tpu.memory_space<vmem>>) attributes {dimension_semantics = [#tpu.dimension_semantics<parallel>], iteration_bounds = array<i64: 1>, scalar_prefetch = 0 : i64, scratch_operands = 0 : i64, tpu.core_type = #tpu.core_type<tc>, window_params = [{transform_indices = @transform_0, window_bounds = array<i64: 4>}, {transform_indices = @transform_1, window_bounds = array<i64: 8, 128>}, {transform_indices = @transform_2, window_bounds = array<i64: 8, 128>}, {transform_indices = @transform_3, window_bounds = array<i64: 8, 128>}]} {
    %c0 = arith.constant 0 : index
    %c0_0 = arith.constant 0 : index
    %0 = vector.load %arg2[%c0, %c0_0] : memref<8x128xf32, #tpu.memory_space<vmem>>, vector<8x128xf32>
    %c0_1 = arith.constant 0 : index
    %1 = memref.load %arg1[%c0_1] : memref<4xf32, #tpu.memory_space<smem>>
    %c1 = arith.constant 1 : index
    %2 = memref.load %arg1[%c1] : memref<4xf32, #tpu.memory_space<smem>>
    %c2 = arith.constant 2 : index
    %3 = memref.load %arg1[%c2] : memref<4xf32, #tpu.memory_space<smem>>
    %c3 = arith.constant 3 : index
    %4 = memref.load %arg1[%c3] : memref<4xf32, #tpu.memory_space<smem>>
    %5 = vector.broadcast %1 : f32 to vector<8x128xf32>
    %6 = arith.mulf %0, %5 : vector<8x128xf32>
    %7 = vector.broadcast %3 : f32 to vector<8x128xf32>
    %8 = arith.addf %6, %7 : vector<8x128xf32>
    %c0_2 = arith.constant 0 : index
    %c0_3 = arith.constant 0 : index
    %9 = vector.load %arg3[%c0_2, %c0_3] : memref<8x128xf32, #tpu.memory_space<vmem>>, vector<8x128xf32>
    tpu.vector_store %arg3[%c0_2, %c0_3], %8 {strides = array<i32>} : memref<8x128xf32, #tpu.memory_space<vmem>>, vector<8x128xf32>,
    %10 = vector.broadcast %2 : f32 to vector<8x128xf32>
    %11 = arith.mulf %0, %10 : vector<8x128xf32>
    %12 = vector.broadcast %4 : f32 to vector<8x128xf32>
    %13 = arith.addf %11, %12 : vector<8x128xf32>
    %c0_4 = arith.constant 0 : index
    %c0_5 = arith.constant 0 : index
    %14 = vector.load %arg4[%c0_4, %c0_5] : memref<8x128xf32, #tpu.memory_space<vmem>>, vector<8x128xf32>
    tpu.vector_store %arg4[%c0_4, %c0_5], %13 {strides = array<i32>} : memref<8x128xf32, #tpu.memory_space<vmem>>, vector<8x128xf32>,
    return
  }
  func.func @transform_0(%arg0: i32) -> i32 {
    %c0_i32 = arith.constant 0 : i32
    %c0_i32_0 = arith.constant 0 : i32
    return %c0_i32 : i32
  }
  func.func @transform_1(%arg0: i32) -> (i32, i32) {
    %c0_i32 = arith.constant 0 : i32
    %c0_i32_0 = arith.constant 0 : i32
    return %arg0, %c0_i32 : i32, i32
  }
  func.func @transform_2(%arg0: i32) -> (i32, i32) {
    %c0_i32 = arith.constant 0 : i32
    %c0_i32_0 = arith.constant 0 : i32
    return %arg0, %c0_i32 : i32, i32
  }
  func.func @transform_3(%arg0: i32) -> (i32, i32) {
    %c0_i32 = arith.constant 0 : i32
    %c0_i32_0 = arith.constant 0 : i32
    return %arg0, %c0_i32 : i32, i32
  }
}

</mosaic_0001>

<llo_original>
// kernel: tpu_custom_call.1
$region0: #{tpu_custom_call.1}
  #allocation0 [shape = 'u32[]', space=smem, size = 0x4, offset = 0x4, fixed_abs, tag = 'smem constant byte address 0x4 - core index']
  #allocation1 [shape = 'u32[72,128]{1,0:T(1,128)}', space=vmem, size = 0x9000, scoped, tag = 'internal scratch']
  %s0 = inlined_call_operand.hbm [shape: f32[4], index: 0, kind: input, shape index: {}]
  %s1 = inlined_call_operand.hbm [shape: f32[8,128], index: 1, kind: input, shape index: {}]
  %s2 = inlined_call_operand.hbm [shape: f32[8,128], index: 2, kind: output, shape index: {0}]
  %s3 = inlined_call_operand.hbm [shape: f32[8,128], index: 3, kind: output, shape index: {1}]
  %4 = xla_tuple %s2, %s3
  %s5 = sld [smem:[#allocation0]]
  $region34: #{tpu_custom_call.1} parent=0
    _
  %s7 = ssub.s32 1, %s5
  %s8 = scalar_select 0, %s7, %s5
  $region1: #{tpu_custom_call.1} parent=0
    #allocation2 [shape = 'u8[512]{0}', space=smem, size = 0x200, scoped, tag = 'input window, operand 0, single buffered']
    #allocation3 [shape = 's32[1]{0}', space=sflag, size = 0x4, scoped, tag = 'scoped memory for tpu_custom_call.1']
    #allocation4 [shape = 's32[1]{0}', space=sflag, size = 0x4, scoped, tag = 'scoped memory for tpu_custom_call.1']
    #allocation5 [shape = 's32[1]{0}', space=sflag, size = 0x4, scoped, tag = 'scoped memory for tpu_custom_call.1']
    #allocation6 [shape = 'u8[4096]{0}', space=vmem, size = 0x1000, scoped, tag = 'input window, operand 1, single buffered']
    #allocation7 [shape = 'u8[4096]{0}', space=vmem, size = 0x1000, scoped, tag = 'output window, operand 0, single buffered']
    #allocation8 [shape = 'u8[4096]{0}', space=vmem, size = 0x1000, scoped, tag = 'output window, operand 1, single buffered']
    #allocation9 [shape = 's32[1]{0}', space=sflag, size = 0x4, scoped, tag = 'scoped memory for tpu_custom_call.1']
    %9 = vsyncpa [#allocation5], 0
    %10 = vsyncpa [#allocation3], 0
    %11 = vsyncpa [#allocation4], 0
    %12 = vsyncpa [#allocation9], 0
    // Predicated region
    $region2: #{tpu_custom_call.1} parent=1 // pred_check
      _
    $region3: #{tpu_custom_call.1} parent=1 // pred_check_branch
      %14 = sbr.rel (0) target = $region5
    $region4: #{tpu_custom_call.1} parent=1 // pred_region
      %16 = vsyncadd [#allocation5], 0
      %s18 = sshll.u32 %s0, 4
      %s19 = int_to_ptr.hbm [resolvable:$true] %s18
      %21 = dma.hbm_to_smem %s19, 16, [#allocation2], [#allocation5]
    $region5: #{tpu_custom_call.1} parent=1 // pred_fallthru
      _
    // Predicated region
    $region6: #{tpu_custom_call.1} parent=1 // pred_check
      _
    $region7: #{tpu_custom_call.1} parent=1 // pred_check_branch
      %23 = sbr.rel (0) target = $region9
    $region8: #{tpu_custom_call.1} parent=1 // pred_region
      %25 = vsyncadd [#allocation3], 0
      %s27 = sshll.u32 %s1, 4
      %s28 = int_to_ptr.hbm [resolvable:$true] %s27
      %s29 = sshll.u32 [#allocation6], 4
      %s30 = int_to_ptr.vmem [resolvable:$true] %s29
      %32 = dma.hbm_to_vmem [thread:$0]  %s28, 128, %s30, [#allocation3]
    $region9: #{tpu_custom_call.1} parent=1 // pred_fallthru
      _
    // Predicated region
    $region10: #{tpu_custom_call.1} parent=1 // pred_check
      _
    $region11: #{tpu_custom_call.1} parent=1 // pred_check_branch
      %34 = sbr.rel (0) target = $region13
    $region12: #{tpu_custom_call.1} parent=1 // pred_region
      %36 = dma.done [#allocation5], 16
    $region13: #{tpu_custom_call.1} parent=1 // pred_fallthru
      _
    // Predicated region
    $region14: #{tpu_custom_call.1} parent=1 // pred_check
      _
    $region15: #{tpu_custom_call.1} parent=1 // pred_check_branch
      %38 = sbr.rel (0) target = $region17
    $region16: #{tpu_custom_call.1} parent=1 // pred_region
      %40 = dma.done [#allocation3], 128
    $region17: #{tpu_custom_call.1} parent=1 // pred_fallthru
      _
    %41 = sfence
    %v42 = vld [vmem:[#allocation6] sm:$0xff]
    %s43 = sld [smem:[#allocation2]]
    %s44 = sld [smem:[#allocation2 + $0x1]]
    %s45 = sld [smem:[#allocation2 + $0x2]]
    %s46 = sld [smem:[#allocation2 + $0x3]]
    %v47 = vstv %s43
    %v48 = vmul.f32 %v42, %v47
    %v49 = vstv %s45
    %v50 = vadd.f32 %v48, %v49
    %51 = vst [vmem:[#allocation7] sm:$0xff] %v50
    %v52 = vstv %s44
    %v53 = vmul.f32 %v42, %v52
    %v54 = vstv %s46
    %v55 = vadd.f32 %v53, %v54
    %56 = vst [vmem:[#allocation8] sm:$0xff] %v55
    // Predicated region
    $region18: #{tpu_custom_call.1} parent=1 // pred_check
      _
    $region19: #{tpu_custom_call.1} parent=1 // pred_check_branch
      %58 = sbr.rel (0) target = $region21
    $region20: #{tpu_custom_call.1} parent=1 // pred_region
      %60 = vsyncadd [#allocation4], 0
      %s62 = sshll.u32 [#allocation7], 4
      %s63 = int_to_ptr.vmem [resolvable:$true] %s62
      %s64 = sshll.u32 %s2, 4
      %s65 = int_to_ptr.hbm [resolvable:$true] %s64
      %67 = dma.vmem_to_hbm [thread:$0]  %s63, 128, %s65, [#allocation4]
    $region21: #{tpu_custom_call.1} parent=1 // pred_fallthru
      _
    // Predicated region
    $region22: #{tpu_custom_call.1} parent=1 // pred_check
      _
    $region23: #{tpu_custom_call.1} parent=1 // pred_check_branch
      %69 = sbr.rel (0) target = $region25
    $region24: #{tpu_custom_call.1} parent=1 // pred_region
      %71 = vsyncadd [#allocation9], 0
      %s73 = sshll.u32 [#allocation8], 4
      %s74 = int_to_ptr.vmem [resolvable:$true] %s73
      %s75 = sshll.u32 %s3, 4
      %s76 = int_to_ptr.hbm [resolvable:$true] %s75
      %78 = dma.vmem_to_hbm [thread:$0]  %s74, 128, %s76, [#allocation9]
    $region25: #{tpu_custom_call.1} parent=1 // pred_fallthru
      _
    // Predicated region
    $region26: #{tpu_custom_call.1} parent=1 // pred_check
      _
    $region27: #{tpu_custom_call.1} parent=1 // pred_check_branch
      %80 = sbr.rel (0) target = $region29
    $region28: #{tpu_custom_call.1} parent=1 // pred_region
      %82 = dma.done [#allocation4], 128
    $region29: #{tpu_custom_call.1} parent=1 // pred_fallthru
      _
    // Predicated region
    $region30: #{tpu_custom_call.1} parent=1 // pred_check
      _
    $region31: #{tpu_custom_call.1} parent=1 // pred_check_branch
      %84 = sbr.rel (0) target = $region33
    $region32: #{tpu_custom_call.1} parent=1 // pred_region
      %86 = dma.done [#allocation9], 128
    $region33: #{tpu_custom_call.1} parent=1 // pred_fallthru
      _
    %87 = vsyncpa [#allocation3], 1
    %88 = vsyncpa [#allocation4], 1
    %89 = vsyncpa [#allocation9], 1
    %90 = vsyncpa [#allocation5], 1

</llo_original>
